<compile_context>
chip_gen: v5e
topology: v5e:2x2
jax: 0.10.0
libtpu: 0.0.40
codegen_flags: <defaults>
</compile_context>

<pallas_src>
import functools

import jax
import jax.numpy as jnp
from jax import lax
from jax.experimental import pallas as pl
from jax.experimental.pallas import tpu as pltpu


_VMEM_LIMIT_BYTES = 32 * 1024 * 1024        # explicit scoped-VMEM limit (all gens)
_PIPELINE_VMEM_BUDGET = 24 * 1024 * 1024    # 2 in x 2 bufs x block + 2 out bufs
_BLOCK_BYTES_TARGET = 4 * 1024 * 1024       # ~4 MiB input blocks (v7x-friendly)
_EPS = 1e-16                                # clamp for ||u||^2 * ||v||^2


def _round_up(x, m):
    return ((x + m - 1) // m) * m


def _feature(u, v, method):
    """Elementwise pair feature, computed in the input dtype."""
    if method == "hadamard-product":
        return u * v
    if method == "addition":
        return u + v
    if method == "l1-weighted":
        return jnp.abs(u - v)
    if method == "l2-weighted":
        d = u - v
        return d * d
    raise ValueError(f"unsupported method {method}")


# ---------------------------------------------------------------------------
# Row path kernels: (tn, D) blocks, per-row (sublane) results -> (tn, 1)
# ---------------------------------------------------------------------------
def _cosine_rows_kernel(u_ref, v_ref, o_ref):
    u = u_ref[...].astype(jnp.float32)
    v = v_ref[...].astype(jnp.float32)
    uv = jnp.sum(u * v, axis=1, keepdims=True)
    uu = jnp.sum(u * u, axis=1, keepdims=True)
    vv = jnp.sum(v * v, axis=1, keepdims=True)
    # Single rsqrt on the EUP; eps clamp avoids NaN for zero-norm/padded rows.
    sim = uv * lax.rsqrt(jnp.maximum(uu * vv, _EPS))
    o_ref[...] = (sim + 1.0) * 0.5


def _classif_rows_kernel(u_ref, v_ref, w_ref, b_ref, o_ref, *, method):
    feat = _feature(u_ref[...], v_ref[...], method)          # input dtype (f32/bf16)
    w = w_ref[...]                                           # (1, D) f32, VMEM-resident
    # VPU multiply + lane reduce (no 1-useful-column MXU matvec here).
    logits = jnp.sum(feat.astype(jnp.float32) * w, axis=1, keepdims=True) + b_ref[0]
    o_ref[...] = jax.nn.sigmoid(logits)


# ---------------------------------------------------------------------------
# Packed (lane-dense) path kernels: (R, 128) blocks holding G = 128//D links
# per row.  s_ref is a small (GP, 128) selection matrix:
#   classif: s[g, l] = w[l % D] if l // D == g else 0   (weight folded in)
#   cosine : s[g, l] = 1        if l // D == g else 0
# One dot_general contracts the 128-lane axis of both operands (same shape as
# q @ k^T in flash attention) and lands per-link results across lanes:
#   out[g, r] = reduction over features of link r*G + g.
# ---------------------------------------------------------------------------
_DOT_DIMS = (((1,), (1,)), ((), ()))


def _classif_packed_kernel(u_ref, v_ref, s_ref, b_ref, o_ref, *, method):
    feat = _feature(u_ref[...], v_ref[...], method).astype(jnp.float32)   # (R, 128)
    s_t = s_ref[...]                                                      # (GP, 128)
    logits = lax.dot_general(s_t, feat, _DOT_DIMS,
                             preferred_element_type=jnp.float32)          # (GP, R)
    o_ref[...] = jax.nn.sigmoid(logits + b_ref[0])


def _cosine_packed_kernel(u_ref, v_ref, s_ref, o_ref):
    u = u_ref[...].astype(jnp.float32)
    v = v_ref[...].astype(jnp.float32)
    s_t = s_ref[...]                                                      # (GP, 128)
    uv = lax.dot_general(s_t, u * v, _DOT_DIMS, preferred_element_type=jnp.float32)
    uu = lax.dot_general(s_t, u * u, _DOT_DIMS, preferred_element_type=jnp.float32)
    vv = lax.dot_general(s_t, v * v, _DOT_DIMS, preferred_element_type=jnp.float32)
    sim = uv * lax.rsqrt(jnp.maximum(uu * vv, _EPS))
    o_ref[...] = (sim + 1.0) * 0.5


# ---------------------------------------------------------------------------
# Tiling
# ---------------------------------------------------------------------------
def _choose_rows(n_rows, in_row_bytes, out_row_bytes, row_align):
    """Rows per grid step: ~4 MiB input blocks, <=24 MiB pipeline, >=4 steps."""
    if n_rows <= row_align:
        return n_rows
    rows = _BLOCK_BYTES_TARGET // max(1, in_row_bytes)
    # VMEM accounting: 2 inputs x 2 pipeline buffers + 2 output buffers.
    per_row = 4 * in_row_bytes + 2 * out_row_bytes
    rows = min(rows, _PIPELINE_VMEM_BUDGET // max(1, per_row))
    # Keep >= 4 grid steps so v7x can shard the parallel axis across both
    # TensorCores and the pipeline has steps to hide DMA behind.
    rows = min(rows, _round_up(pl.cdiv(n_rows, 4), row_align))
    rows = max(row_align, (rows // row_align) * row_align)
    return n_rows if n_rows <= rows else rows


# ---------------------------------------------------------------------------
# Wrapper
# ---------------------------------------------------------------------------
def pairwise_link_prediction(u, v, method, weight=None, bias=None, *, tile_rows=None):
    """JAX/Pallas equivalent of PairwiseLinkPredictionLayer.forward.

    u, v: (N, D) float32 or bfloat16.  Returns (N,) float32.
    tile_rows (optional): rows per grid step; multiple of 128 for the packed
    path (D | 128), multiple of 8 otherwise.
    """
    n, d = u.shape
    assert v.shape == (n, d)
    itemsize = jnp.dtype(u.dtype).itemsize

    classif = method in ("hadamard-product", "addition", "l1-weighted", "l2-weighted")
    if not classif and method != "cosine":
        raise NotImplementedError(method)

    compiler_params = pltpu.CompilerParams(
        dimension_semantics=("parallel",),
        vmem_limit_bytes=_VMEM_LIMIT_BYTES,
    )

    if classif:
        w = jnp.asarray(weight, jnp.float32).reshape(d)   # torch Linear weight (1, D)
        b = jnp.asarray(bias, jnp.float32).reshape(1)     # torch Linear bias (1,)

    # ---------------- lane-dense packed path (D divides 128) ----------------
    packed_ok = d <= 128 and 128 % d == 0 and n % (128 // d) == 0 and n > 0
    if packed_ok:
        g = 128 // d                 # links per 128-lane row
        gp = max(8, g)               # pad group rows up to a sublane tile
        m = n // g                   # packed rows
        # NOTE: ideally the caller stores embeddings lane-packed already; if
        # XLA has to materialize this reshape it costs one extra HBM pass, but
        # the kernel itself runs 128/D leaner than the padded layout.
        up = u.reshape(m, 128)
        vp = v.reshape(m, 128)

        in_row_bytes = 128 * itemsize
        out_row_bytes = gp * 4
        r = tile_rows if tile_rows is not None else _choose_rows(
            m, in_row_bytes, out_row_bytes, 128)
        grid = (pl.cdiv(m, r),)

        uv_spec = pl.BlockSpec((r, 128), lambda i: (i, 0))
        sel_spec = pl.BlockSpec((gp, 128), lambda i: (0, 0))   # VMEM-resident
        out_spec = pl.BlockSpec((gp, r), lambda i: (0, i))     # lane-dense rows
        out_shape = jax.ShapeDtypeStruct((gp, m), jnp.float32)

        lane = jnp.arange(128)
        group = lane // d
        group_mask = group[None, :] == jnp.arange(gp)[:, None]          # (gp, 128)

        if classif:
            s_t = jnp.where(group_mask, jnp.tile(w, g)[None, :], 0.0).astype(jnp.float32)
            kernel = functools.partial(_classif_packed_kernel, method=method)
            out2d = pl.pallas_call(
                kernel,
                out_shape=out_shape,
                grid=grid,
                in_specs=[uv_spec, uv_spec, sel_spec,
                          pl.BlockSpec(memory_space=pltpu.MemorySpace.SMEM)],
                out_specs=out_spec,
                compiler_params=compiler_params,
            )(up, vp, s_t, b)
        else:
            s_t = group_mask.astype(jnp.float32)
            out2d = pl.pallas_call(
                _cosine_packed_kernel,
                out_shape=out_shape,
                grid=grid,
                in_specs=[uv_spec, uv_spec, sel_spec],
                out_specs=out_spec,
                compiler_params=compiler_params,
            )(up, vp, s_t)

        # out2d[g, r] = prob(link r*G + g).  Tiny (G, M) relayout back to (N,).
        return jnp.transpose(out2d[:g]).reshape(n)

    # ---------------- general row path (D does not divide 128) ---------------
    in_row_bytes = _round_up(d, 128) * itemsize   # VMEM lanes pad D up to 128
    out_row_bytes = 128 * 4                       # (tn, 1) f32 pads lanes to 128
    tn = tile_rows if tile_rows is not None else _choose_rows(
        n, in_row_bytes, out_row_bytes, 8)
    grid = (pl.cdiv(n, tn),)

    uv_spec = pl.BlockSpec((tn, d), lambda i: (i, 0))
    out_spec = pl.BlockSpec((tn, 1), lambda i: (i, 0))
    out_shape = jax.ShapeDtypeStruct((n, 1), jnp.float32)

    if classif:
        kernel = functools.partial(_classif_rows_kernel, method=method)
        out = pl.pallas_call(
            kernel,
            out_shape=out_shape,
            grid=grid,
            in_specs=[uv_spec, uv_spec,
                      pl.BlockSpec((1, d), lambda i: (0, 0)),            # resident
                      pl.BlockSpec(memory_space=pltpu.MemorySpace.SMEM)],
            out_specs=out_spec,
            compiler_params=compiler_params,
        )(u, v, w.reshape(1, d), b)
    else:
        out = pl.pallas_call(
            _cosine_rows_kernel,
            out_shape=out_shape,
            grid=grid,
            in_specs=[uv_spec, uv_spec],
            out_specs=out_spec,
            compiler_params=compiler_params,
        )(u, v)
    return out[:, 0]


# ---------------------------------------------------------------------------
# Pure-JAX reference (mirrors the PyTorch forward)
# ---------------------------------------------------------------------------
def _reference(u, v, method, weight=None, bias=None):
    u = u.astype(jnp.float32)
    v = v.astype(jnp.float32)
    if method == "cosine":
        un = u / jnp.linalg.norm(u, axis=1, keepdims=True)
        vn = v / jnp.linalg.norm(v, axis=1, keepdims=True)
        return (jnp.sum(un * vn, axis=1) + 1.0) / 2.0
    if method == "hadamard-product":
        feat = u * v
    elif method == "addition":
        feat = u + v
    elif method == "l1-weighted":
        feat = jnp.abs(u - v)
    elif method == "l2-weighted":
        feat = (u - v) ** 2
    logits = feat @ weight.reshape(-1, 1) + bias
    return jax.nn.sigmoid(logits)[:, 0]


# ---------------------------------------------------------------------------
# Main
# ---------------------------------------------------------------------------
if __name__ == "__main__":
    methods = ["cosine", "hadamard-product", "addition", "l1-weighted", "l2-weighted"]

    def make_inputs(key, n, d):
        k_u, k_v, k_w, k_b = jax.random.split(key, 4)
        uu = jax.random.normal(k_u, (n, d), dtype=jnp.float32)
        vv = jax.random.normal(k_v, (n, d), dtype=jnp.float32)
        bound = 1.0 / (d ** 0.5)     # PyTorch Linear default init range
        ww = jax.random.uniform(k_w, (d,), jnp.float32, -bound, bound)
        bb = jax.random.uniform(k_b, (), jnp.float32, -bound, bound)
        return uu, vv, ww, bb

    def check(uu, vv, ww, bb, method, tile_rows, atol):
        got = jax.block_until_ready(
            pairwise_link_prediction(uu, vv, method, ww, bb, tile_rows=tile_rows))
        want = _reference(uu, vv, method, ww, bb)
        assert got.shape == want.shape == (uu.shape[0],), (method, got.shape)
        err = float(jnp.max(jnp.abs(got - want)))
        assert err <= atol, (method, err)

    # --- packed lane-dense path: D=32 -> 4 links per 128-lane row -----------
    # f32 tolerance is loose enough to tolerate the MXU's f32 pass
    # decomposition on all generations; indexing/structural bugs give O(1).
    N, D = 1024, 32
    u, v, w, b = make_inputs(jax.random.PRNGKey(0), N, D)
    for m in methods:
        check(u, v, w, b, m, 128, 1e-2)
    # ragged trailing packed block
    check(u[:900], v[:900], w, b, "hadamard-product", 128, 1e-2)
    # auto tile selection
    check(u, v, w, b, "cosine", None, 1e-2)
    # bf16 embeddings (halved HBM traffic); tolerance reflects bf16 rounding
    check(u.astype(jnp.bfloat16), v.astype(jnp.bfloat16), w, b,
          "l1-weighted", 128, 2e-2)

    # --- general row path: D=96 does not divide 128 -------------------------
    N2, D2 = 512, 96
    u2, v2, w2, b2 = make_inputs(jax.random.PRNGKey(1), N2, D2)
    for m in methods:
        check(u2, v2, w2, b2, m, 128, 1e-5)
    # ragged trailing row block
    check(u2[:300], v2[:300], w2, b2, "l2-weighted", 128, 1e-5)
    # auto tile selection on the row path
    check(u2, v2, w2, b2, "addition", None, 1e-5)

    print("KERNEL_OK")
</pallas_src>

<mosaic_0001>
module attributes {stable_mosaic.version = 11 : i64} {
  func.func @_cosine_packed_kernel(%arg0: i32, %arg1: memref<128x128xf32, #tpu.memory_space<vmem>>, %arg2: memref<128x128xf32, #tpu.memory_space<vmem>>, %arg3: memref<8x128xf32, #tpu.memory_space<vmem>>, %arg4: memref<8x128xf32, #tpu.memory_space<vmem>>) attributes {dimension_semantics = [#tpu.dimension_semantics<parallel>], iteration_bounds = array<i64: 2>, scalar_prefetch = 0 : i64, scratch_operands = 0 : i64, tpu.core_type = #tpu.core_type<tc>, window_params = [{transform_indices = @transform_0, window_bounds = array<i64: 128, 128>}, {transform_indices = @transform_1, window_bounds = array<i64: 128, 128>}, {pipeline_mode = #tpu.pipeline_mode<synchronous>, transform_indices = @transform_2, window_bounds = array<i64: 8, 128>}, {transform_indices = @transform_3, window_bounds = array<i64: 8, 128>}]} {
    %c0 = arith.constant 0 : index
    %c0_0 = arith.constant 0 : index
    %0 = vector.load %arg1[%c0, %c0_0] : memref<128x128xf32, #tpu.memory_space<vmem>>, vector<128x128xf32>
    %c0_1 = arith.constant 0 : index
    %c0_2 = arith.constant 0 : index
    %1 = vector.load %arg2[%c0_1, %c0_2] : memref<128x128xf32, #tpu.memory_space<vmem>>, vector<128x128xf32>
    %c0_3 = arith.constant 0 : index
    %c0_4 = arith.constant 0 : index
    %2 = vector.load %arg3[%c0_3, %c0_4] : memref<8x128xf32, #tpu.memory_space<vmem>>, vector<8x128xf32>
    %3 = arith.mulf %0, %1 : vector<128x128xf32>
    %cst = arith.constant dense<0.000000e+00> : vector<8x128xf32>
    %4 = tpu.matmul %2, %3, %cst {dimension_numbers = #tpu.dot_dimension_numbers<[1], [1], [0], [0], [0, 0, 1, 0], [], []>} : vector<8x128xf32>, vector<128x128xf32>, vector<8x128xf32> -> vector<8x128xf32>
    %5 = arith.mulf %0, %0 : vector<128x128xf32>
    %cst_5 = arith.constant dense<0.000000e+00> : vector<8x128xf32>
    %6 = tpu.matmul %2, %5, %cst_5 {dimension_numbers = #tpu.dot_dimension_numbers<[1], [1], [0], [0], [0, 0, 1, 0], [], []>} : vector<8x128xf32>, vector<128x128xf32>, vector<8x128xf32> -> vector<8x128xf32>
    %7 = arith.mulf %1, %1 : vector<128x128xf32>
    %cst_6 = arith.constant dense<0.000000e+00> : vector<8x128xf32>
    %8 = tpu.matmul %2, %7, %cst_6 {dimension_numbers = #tpu.dot_dimension_numbers<[1], [1], [0], [0], [0, 0, 1, 0], [], []>} : vector<8x128xf32>, vector<128x128xf32>, vector<8x128xf32> -> vector<8x128xf32>
    %9 = arith.mulf %6, %8 : vector<8x128xf32>
    %cst_7 = arith.constant 1.000000e-16 : f32
    %10 = vector.broadcast %cst_7 : f32 to vector<8x128xf32>
    %11 = arith.maximumf %9, %10 : vector<8x128xf32>
    %12 = math.rsqrt %11 : vector<8x128xf32>
    %13 = arith.mulf %4, %12 : vector<8x128xf32>
    %cst_8 = arith.constant 1.000000e+00 : f32
    %14 = vector.broadcast %cst_8 : f32 to vector<8x128xf32>
    %15 = arith.addf %13, %14 : vector<8x128xf32>
    %cst_9 = arith.constant 5.000000e-01 : f32
    %16 = vector.broadcast %cst_9 : f32 to vector<8x128xf32>
    %17 = arith.mulf %15, %16 : vector<8x128xf32>
    %c0_10 = arith.constant 0 : index
    %c0_11 = arith.constant 0 : index
    %18 = vector.load %arg4[%c0_10, %c0_11] : memref<8x128xf32, #tpu.memory_space<vmem>>, vector<8x128xf32>
    tpu.vector_store %arg4[%c0_10, %c0_11], %17 {strides = array<i32>} : memref<8x128xf32, #tpu.memory_space<vmem>>, vector<8x128xf32>,
    return
  }
  func.func @transform_0(%arg0: i32) -> (i32, i32) {
    %c0_i32 = arith.constant 0 : i32
    %c0_i32_0 = arith.constant 0 : i32
    return %arg0, %c0_i32 : i32, i32
  }
  func.func @transform_1(%arg0: i32) -> (i32, i32) {
    %c0_i32 = arith.constant 0 : i32
    %c0_i32_0 = arith.constant 0 : i32
    return %arg0, %c0_i32 : i32, i32
  }
  func.func @transform_2(%arg0: i32) -> (i32, i32) {
    %c0_i32 = arith.constant 0 : i32
    %c0_i32_0 = arith.constant 0 : i32
    %c0_i32_1 = arith.constant 0 : i32
    return %c0_i32, %c0_i32_0 : i32, i32
  }
  func.func @transform_3(%arg0: i32) -> (i32, i32) {
    %c0_i32 = arith.constant 0 : i32
    %c0_i32_0 = arith.constant 0 : i32
    return %c0_i32, %arg0 : i32, i32
  }
}

</mosaic_0001>

<llo_original>
// kernel: tpu_custom_call.1
$region0: #{tpu_custom_call.1}
  #allocation0 [shape = 'u32[]', space=smem, size = 0x4, offset = 0x4, fixed_abs, tag = 'smem constant byte address 0x4 - core index']
  #allocation1 [shape = 'u32[72,128]{1,0:T(1,128)}', space=vmem, size = 0x9000, scoped, tag = 'internal scratch']
  %s0 = inlined_call_operand.hbm [shape: f32[256,128], index: 0, kind: input, shape index: {}]
  %s1 = inlined_call_operand.hbm [shape: f32[256,128], index: 1, kind: input, shape index: {}]
  %s2 = inlined_call_operand.hbm [shape: f32[8,128], index: 2, kind: input, shape index: {}]
  %s3 = inlined_call_operand.hbm [shape: f32[8,256], index: 3, kind: output, shape index: {}]
  %s4 = sld [smem:[#allocation0]]
  $region57: #{tpu_custom_call.1} parent=0
    _
  %s6 = ssub.s32 1, %s4
  %s7 = scalar_select 0, %s6, %s4
  $region1: #{tpu_custom_call.1} parent=0
    #allocation2 [shape = 'u8[131072]{0}', space=vmem, size = 0x20000, scoped, tag = 'input window, operand 0']
    #allocation3 [shape = 's32[2]{0}', space=sflag, size = 0x8, scoped, tag = 'scoped memory for tpu_custom_call.1']
    #allocation4 [shape = 's32[2]{0}', space=sflag, size = 0x8, scoped, tag = 'scoped memory for tpu_custom_call.1']
    #allocation5 [shape = 'u8[131072]{0}', space=vmem, size = 0x20000, scoped, tag = 'input window, operand 1']
    #allocation6 [shape = 's32[2]{0}', space=sflag, size = 0x8, scoped, tag = 'scoped memory for tpu_custom_call.1']
    #allocation7 [shape = 'u8[4096]{0}', space=vmem, size = 0x1000, scoped, tag = 'input window, operand 2, single buffered']
    #allocation8 [shape = 'u8[8192]{0}', space=vmem, size = 0x2000, scoped, tag = 'output window, operand 0']
    %8 = vsyncpa [#allocation3], 0
    %s9 = scalar_lea.sflag [#allocation3], 1
    %10 = vsyncpa %s9, 0
    %11 = vsyncpa [#allocation6], 0
    %s12 = scalar_lea.sflag [#allocation6], 1
    %13 = vsyncpa %s12, 0
    %14 = vsyncpa [#allocation4], 0
    %s15 = scalar_lea.sflag [#allocation4], 1
    %16 = vsyncpa %s15, 0
    loop: start=0, step=1, limit=4
    $region2: #{tpu_custom_call.1} parent=1 // loop_pre_header
      _
    $region3: #{tpu_custom_call.1} parent=1 // loop_header
      %s18 = sphi 0, %s22
      %p19 = scmp.ge.s32.totalorder %s18, 4
      %s28 = sphi 0, %s30
      %s31 = sphi 0, %s28
      %s32 = sphi 0, %s31
      %s48 = sphi 0, %s32
      %s54 = sphi 0, %s56
      %s57 = sphi 0, %s54
      %s58 = sphi 0, %s57
      %s74 = sphi 0, %s58
      %s78 = sphi 0, %s78
      %s80 = sphi 0, %s78
      %s81 = sphi 0, %s80
      %s95 = sphi 0, %s81
      %s101 = sphi 0, %s103
      %s104 = sphi 0, %s101
      %s105 = sphi 0, %s104
      %s121 = sphi 0, %s105
    $region4: #{tpu_custom_call.1} parent=1 // loop_header_branch
      %21 = sbr.rel (%p19) target = $region8
    $region5: #{tpu_custom_call.1} parent=1 // loop_body
      %s23 = ssub.s32 %s18, 1
      %s24 = ssub.s32 %s18, 2
      %s25 = sadd.s32 %s18, 1
      %s26 = ssub.s32 %s18, %s25
      %p27 = scmp.eq.s32.totalorder %s26, 0
      %s29 = sadd.s32 %s28, 1
      %s30 = scalar_select %p27, %s28, %s29
      %p33 = pneg %p27
      %p34 = scmp.eq.s32.totalorder %s18, 1
      %p35 = por %p33, %p34
      %p36 = scmp.ne.s32.totalorder %s28, %s31
      %p37 = scmp.eq.s32.totalorder %s18, 0
      %p38 = por %p36, %p37
      %p39 = scmp.ne.s32.totalorder %s28, %s31
      %p40 = scmp.eq.s32.totalorder %s23, 1
      %p41 = por %p39, %p40
      %p42 = scmp.ne.s32.totalorder %s31, %s32
      %p43 = scmp.eq.s32.totalorder %s23, 0
      %p44 = por %p42, %p43
      %p45 = scmp.ne.s32.totalorder %s31, %s32
      %p46 = scmp.eq.s32.totalorder %s24, 1
      %p47 = por %p45, %p46
      %p49 = scmp.ne.s32.totalorder %s32, %s48
      %p50 = scmp.eq.s32.totalorder %s24, 0
      %p51 = por %p49, %p50
      %s52 = ssub.s32 %s18, %s25
      %p53 = scmp.eq.s32.totalorder %s52, 0
      %s55 = sadd.s32 %s54, 1
      %s56 = scalar_select %p53, %s54, %s55
      %p59 = pneg %p53
      %p60 = scmp.eq.s32.totalorder %s18, 1
      %p61 = por %p59, %p60
      %p62 = scmp.ne.s32.totalorder %s54, %s57
      %p63 = scmp.eq.s32.totalorder %s18, 0
      %p64 = por %p62, %p63
      %p65 = scmp.ne.s32.totalorder %s54, %s57
      %p66 = scmp.eq.s32.totalorder %s23, 1
      %p67 = por %p65, %p66
      %p68 = scmp.ne.s32.totalorder %s57, %s58
      %p69 = scmp.eq.s32.totalorder %s23, 0
      %p70 = por %p68, %p69
      %p71 = scmp.ne.s32.totalorder %s57, %s58
      %p72 = scmp.eq.s32.totalorder %s24, 1
      %p73 = por %p71, %p72
      %p75 = scmp.ne.s32.totalorder %s58, %s74
      %p76 = scmp.eq.s32.totalorder %s24, 0
      %p77 = por %p75, %p76
      %s79 = sadd.s32 %s78, 1
      %p82 = scmp.eq.s32.totalorder %s18, 1
      %p83 = scmp.ne.s32.totalorder %s78, %s80
      %p84 = scmp.eq.s32.totalorder %s18, 0
      %p85 = por %p83, %p84
      %p86 = scmp.ne.s32.totalorder %s78, %s80
      %p87 = scmp.eq.s32.totalorder %s23, 1
      %p88 = por %p86, %p87
      %p89 = scmp.ne.s32.totalorder %s80, %s81
      %p90 = scmp.eq.s32.totalorder %s23, 0
      %p91 = por %p89, %p90
      %p92 = scmp.ne.s32.totalorder %s80, %s81
      %p93 = scmp.eq.s32.totalorder %s24, 1
      %p94 = por %p92, %p93
      %p96 = scmp.ne.s32.totalorder %s81, %s95
      %p97 = scmp.eq.s32.totalorder %s24, 0
      %p98 = por %p96, %p97
      %s99 = ssub.s32 %s18, %s25
      %p100 = scmp.eq.s32.totalorder %s99, 0
      %s102 = sadd.s32 %s101, 1
      %s103 = scalar_select %p100, %s101, %s102
      %p106 = pneg %p100
      %p107 = scmp.eq.s32.totalorder %s18, 1
      %p108 = por %p106, %p107
      %p109 = scmp.ne.s32.totalorder %s101, %s104
      %p110 = scmp.eq.s32.totalorder %s18, 0
      %p111 = por %p109, %p110
      %p112 = scmp.ne.s32.totalorder %s101, %s104
      %p113 = scmp.eq.s32.totalorder %s23, 1
      %p114 = por %p112, %p113
      %p115 = scmp.ne.s32.totalorder %s104, %s105
      %p116 = scmp.eq.s32.totalorder %s23, 0
      %p117 = por %p115, %p116
      %p118 = scmp.ne.s32.totalorder %s104, %s105
      %p119 = scmp.eq.s32.totalorder %s24, 1
      %p120 = por %p118, %p119
      %p122 = scmp.ne.s32.totalorder %s105, %s121
      %p123 = scmp.eq.s32.totalorder %s24, 0
      %p124 = por %p122, %p123
      %p125 = scmp.le.s32.totalorder 1, %s18
      %p126 = scmp.lt.s32.totalorder %s18, 3
      %p127 = pnand %p125, %p126
      %p128 = pneg %p127
      // Predicated region
      $region9: #{tpu_custom_call.1} parent=5 // pred_check
        _
      $region10: #{tpu_custom_call.1} parent=5 // pred_check_branch
        %130 = sbr.rel (%p127) target = $region12
      $region11: #{tpu_custom_call.1} parent=5 // pred_region
        %s131 = ssub.s32 %s18, 1
        // Predicated region
        $region13: #{tpu_custom_call.1} parent=11 // pred_check
          %p132 = pneg %p91
        $region14: #{tpu_custom_call.1} parent=11 // pred_check_branch
          %134 = sbr.rel (%p132) target = $region16
        $region15: #{tpu_custom_call.1} parent=11 // pred_region
          %136 = vsyncadd [#allocation6], 0
          %s138 = sshll.u32 %s2, 4
          %s139 = int_to_ptr.hbm [resolvable:$true] %s138
          %s140 = sshll.u32 [#allocation7], 4
          %s141 = int_to_ptr.vmem [resolvable:$true] %s140
          %143 = dma.hbm_to_vmem [thread:$0]  %s139, 128, %s141, [#allocation6]
        $region16: #{tpu_custom_call.1} parent=11 // pred_fallthru
          _
      $region12: #{tpu_custom_call.1} parent=5 // pred_fallthru
        _
      %p144 = scmp.lt.s32.totalorder %s18, 2
      // Predicated region
      $region17: #{tpu_custom_call.1} parent=5 // pred_check
        %p145 = pneg %p144
      $region18: #{tpu_custom_call.1} parent=5 // pred_check_branch
        %147 = sbr.rel (%p145) target = $region20
      $region19: #{tpu_custom_call.1} parent=5 // pred_region
        // Predicated region
        $region21: #{tpu_custom_call.1} parent=19 // pred_check
          %p148 = pneg %p38
        $region22: #{tpu_custom_call.1} parent=19 // pred_check_branch
          %150 = sbr.rel (%p148) target = $region24
        $region23: #{tpu_custom_call.1} parent=19 // pred_region
          %s151 = sand.u32 %s28, 1
          %s152 = scalar_lea.sflag [#allocation3], %s151
          %s153 = sand.u32 %s28, 1
          %s154 = smul.addr %s153, 128
          %s155 = scalar_lea.vmem [#allocation2], %s154
          %s156 = smul.u32 16, %s18
          %158 = vsyncadd %s152, 0
          %s159 = smul.addr %s156, 8
          %s160 = scalar_lea.hbm %s0, %s159
          %s161 = sshll.u32 %s160, 4
          %s162 = int_to_ptr.hbm [resolvable:$true] %s161
          %s163 = sshll.u32 %s155, 4
          %s164 = int_to_ptr.vmem [resolvable:$true] %s163
          %169 = dma.hbm_to_vmem [thread:$0]  %s162, 2048, %s164, %s152, 128, 128, 8
        $region24: #{tpu_custom_call.1} parent=19 // pred_fallthru
          _
        // Predicated region
        $region25: #{tpu_custom_call.1} parent=19 // pred_check
          %p170 = pneg %p64
        $region26: #{tpu_custom_call.1} parent=19 // pred_check_branch
          %172 = sbr.rel (%p170) target = $region28
        $region27: #{tpu_custom_call.1} parent=19 // pred_region
          %s173 = sand.u32 %s18, 1
          %s174 = scalar_lea.sflag [#allocation6], %s173
          %s175 = sand.u32 %s54, 1
          %s176 = smul.addr %s175, 128
          %s177 = scalar_lea.vmem [#allocation5], %s176
          %s178 = smul.u32 16, %s18
          %180 = vsyncadd %s174, 0
          %s181 = smul.addr %s178, 8
          %s182 = scalar_lea.hbm %s1, %s181
          %s183 = sshll.u32 %s182, 4
          %s184 = int_to_ptr.hbm [resolvable:$true] %s183
          %s185 = sshll.u32 %s177, 4
          %s186 = int_to_ptr.vmem [resolvable:$true] %s185
          %191 = dma.hbm_to_vmem [thread:$0]  %s184, 2048, %s186, %s174, 128, 128, 8
        $region28: #{tpu_custom_call.1} parent=19 // pred_fallthru
          _
      $region20: #{tpu_custom_call.1} parent=5 // pred_fallthru
        _
      %p192 = scmp.le.s32.totalorder 1, %s18
      %p193 = scmp.lt.s32.totalorder %s18, 3
      %p194 = pnand %p192, %p193
      %p195 = pneg %p194
      // Predicated region
      $region29: #{tpu_custom_call.1} parent=5 // pred_check
        _
      $region30: #{tpu_custom_call.1} parent=5 // pred_check_branch
        %197 = sbr.rel (%p194) target = $region32
      $region31: #{tpu_custom_call.1} parent=5 // pred_region
        %s198 = ssub.s32 %s18, 1
        %s199 = sand.u32 %s31, 1
        %s200 = scalar_lea.sflag [#allocation3], %s199
        %s201 = sand.u32 %s31, 1
        %s202 = smul.addr %s201, 128
        %s203 = scalar_lea.vmem [#allocation2], %s202
        // Predicated region
        $region33: #{tpu_custom_call.1} parent=31 // pred_check
          %p204 = pneg %p44
        $region34: #{tpu_custom_call.1} parent=31 // pred_check_branch
          %206 = sbr.rel (%p204) target = $region36
        $region35: #{tpu_custom_call.1} parent=31 // pred_region
          %208 = dma.done %s200, 2048
        $region36: #{tpu_custom_call.1} parent=31 // pred_fallthru
          _
        %s209 = sand.u32 %s23, 1
        %s210 = scalar_lea.sflag [#allocation6], %s209
        %s211 = sand.u32 %s57, 1
        %s212 = smul.addr %s211, 128
        %s213 = scalar_lea.vmem [#allocation5], %s212
        // Predicated region
        $region37: #{tpu_custom_call.1} parent=31 // pred_check
          %p214 = pneg %p70
        $region38: #{tpu_custom_call.1} parent=31 // pred_check_branch
          %216 = sbr.rel (%p214) target = $region40
        $region39: #{tpu_custom_call.1} parent=31 // pred_region
          %218 = dma.done %s210, 2048
        $region40: #{tpu_custom_call.1} parent=31 // pred_fallthru
          _
        // Predicated region
        $region41: #{tpu_custom_call.1} parent=31 // pred_check
          %p219 = pneg %p91
        $region42: #{tpu_custom_call.1} parent=31 // pred_check_branch
          %221 = sbr.rel (%p219) target = $region44
        $region43: #{tpu_custom_call.1} parent=31 // pred_region
          %223 = dma.done [#allocation6], 128
        $region44: #{tpu_custom_call.1} parent=31 // pred_fallthru
          _
        %s224 = sand.u32 %s31, 1
        %s225 = scalar_lea.sflag [#allocation3], %s224
        %s226 = sand.u32 %s31, 1
        %s227 = smul.addr %s226, 128
        %s228 = scalar_lea.vmem [#allocation2], %s227
        %p229 = pneg %p44
        %p230 = pneg %p41
        %s231 = sand.u32 %s23, 1
        %s232 = scalar_lea.sflag [#allocation6], %s231
        %s233 = sand.u32 %s57, 1
        %s234 = smul.addr %s233, 128
        %s235 = scalar_lea.vmem [#allocation5], %s234
        %p236 = pneg %p70
        %p237 = pneg %p67
        %p238 = pneg %p91
        %p239 = pneg %p88
        %p240 = pneg %p117
        %p241 = pneg %p114
        %s242 = sand.u32 %s104, 1
        %s243 = scalar_lea.sflag [#allocation4], %s242
        %s244 = sand.u32 %s104, 1
        %s245 = smul.addr %s244, 8
        %s246 = scalar_lea.vmem [#allocation8], %s245
        %s247 = smul.u32 16, %s23
        %s248 = smul.u32 16, %s23
        %v249 = vld [vmem:[%s203] sm:$0xff]
        %v250 = vld [vmem:[%s203 + $0x8] sm:$0xff]
        %v251 = vld [vmem:[%s203 + $0x10] sm:$0xff]
        %v252 = vld [vmem:[%s203 + $0x18] sm:$0xff]
        %v253 = vld [vmem:[%s203 + $0x20] sm:$0xff]
        %v254 = vld [vmem:[%s203 + $0x28] sm:$0xff]
        %v255 = vld [vmem:[%s203 + $0x30] sm:$0xff]
        %v256 = vld [vmem:[%s203 + $0x38] sm:$0xff]
        %v257 = vld [vmem:[%s203 + $0x40] sm:$0xff]
        %v258 = vld [vmem:[%s203 + $0x48] sm:$0xff]
        %v259 = vld [vmem:[%s203 + $0x50] sm:$0xff]
        %v260 = vld [vmem:[%s203 + $0x58] sm:$0xff]
        %v261 = vld [vmem:[%s203 + $0x60] sm:$0xff]
        %v262 = vld [vmem:[%s203 + $0x68] sm:$0xff]
        %v263 = vld [vmem:[%s203 + $0x70] sm:$0xff]
        %v264 = vld [vmem:[%s203 + $0x78] sm:$0xff]
        %v265 = vld [vmem:[%s213] sm:$0xff]
        %v266 = vld [vmem:[%s213 + $0x8] sm:$0xff]
        %v267 = vld [vmem:[%s213 + $0x10] sm:$0xff]
        %v268 = vld [vmem:[%s213 + $0x18] sm:$0xff]
        %v269 = vld [vmem:[%s213 + $0x20] sm:$0xff]
        %v270 = vld [vmem:[%s213 + $0x28] sm:$0xff]
        %v271 = vld [vmem:[%s213 + $0x30] sm:$0xff]
        %v272 = vld [vmem:[%s213 + $0x38] sm:$0xff]
        %v273 = vld [vmem:[%s213 + $0x40] sm:$0xff]
        %v274 = vld [vmem:[%s213 + $0x48] sm:$0xff]
        %v275 = vld [vmem:[%s213 + $0x50] sm:$0xff]
        %v276 = vld [vmem:[%s213 + $0x58] sm:$0xff]
        %v277 = vld [vmem:[%s213 + $0x60] sm:$0xff]
        %v278 = vld [vmem:[%s213 + $0x68] sm:$0xff]
        %v279 = vld [vmem:[%s213 + $0x70] sm:$0xff]
        %v280 = vld [vmem:[%s213 + $0x78] sm:$0xff]
        %v281 = vld [vmem:[#allocation7] sm:$0xff]
        %v282 = vmul.f32 %v249, %v265
        %v283 = vmul.f32 %v250, %v266
        %v284 = vmul.f32 %v251, %v267
        %v285 = vmul.f32 %v252, %v268
        %v286 = vmul.f32 %v253, %v269
        %v287 = vmul.f32 %v254, %v270
        %v288 = vmul.f32 %v255, %v271
        %v289 = vmul.f32 %v256, %v272
        %v290 = vmul.f32 %v257, %v273
        %v291 = vmul.f32 %v258, %v274
        %v292 = vmul.f32 %v259, %v275
        %v293 = vmul.f32 %v260, %v276
        %v294 = vmul.f32 %v261, %v277
        %v295 = vmul.f32 %v262, %v278
        %v296 = vmul.f32 %v263, %v279
        %v297 = vmul.f32 %v264, %v280
        %298 = vmatpush.xpose.msra.mxu0 %v297
        %299 = vmatpush.xpose.msra.mxu0 %v296
        %300 = vmatpush.xpose.msra.mxu0 %v295
        %301 = vmatpush.xpose.msra.mxu0 %v294
        %302 = vmatpush.xpose.msra.mxu0 %v293
        %303 = vmatpush.xpose.msra.mxu0 %v292
        %304 = vmatpush.xpose.msra.mxu0 %v291
        %305 = vmatpush.xpose.msra.mxu0 %v290
        %306 = vmatpush.xpose.msra.mxu0 %v289
        %307 = vmatpush.xpose.msra.mxu0 %v288
        %308 = vmatpush.xpose.msra.mxu0 %v287
        %309 = vmatpush.xpose.msra.mxu0 %v286
        %310 = vmatpush.xpose.msra.mxu0 %v285
        %311 = vmatpush.xpose.msra.mxu0 %v284
        %312 = vmatpush.xpose.msra.mxu0 %v283
        %313 = vmatpush.xpose.msra.mxu0 %v282
        %314 = vmatmul.f32.gmra.mxu0 %v281
        %v315 = vpop.f32.mrf.mxu0
        %v316 = vadd.f32 0.0, %v315
        %317 = vdwg.mxu0
        %v318 = vmul.f32 %v249, %v249
        %v319 = vmul.f32 %v250, %v250
        %v320 = vmul.f32 %v251, %v251
        %v321 = vmul.f32 %v252, %v252
        %v322 = vmul.f32 %v253, %v253
        %v323 = vmul.f32 %v254, %v254
        %v324 = vmul.f32 %v255, %v255
        %v325 = vmul.f32 %v256, %v256
        %v326 = vmul.f32 %v257, %v257
        %v327 = vmul.f32 %v258, %v258
        %v328 = vmul.f32 %v259, %v259
        %v329 = vmul.f32 %v260, %v260
        %v330 = vmul.f32 %v261, %v261
        %v331 = vmul.f32 %v262, %v262
        %v332 = vmul.f32 %v263, %v263
        %v333 = vmul.f32 %v264, %v264
        %334 = vmatpush.xpose.msra.mxu0 %v333
        %335 = vmatpush.xpose.msra.mxu0 %v332
        %336 = vmatpush.xpose.msra.mxu0 %v331
        %337 = vmatpush.xpose.msra.mxu0 %v330
        %338 = vmatpush.xpose.msra.mxu0 %v329
        %339 = vmatpush.xpose.msra.mxu0 %v328
        %340 = vmatpush.xpose.msra.mxu0 %v327
        %341 = vmatpush.xpose.msra.mxu0 %v326
        %342 = vmatpush.xpose.msra.mxu0 %v325
        %343 = vmatpush.xpose.msra.mxu0 %v324
        %344 = vmatpush.xpose.msra.mxu0 %v323
        %345 = vmatpush.xpose.msra.mxu0 %v322
        %346 = vmatpush.xpose.msra.mxu0 %v321
        %347 = vmatpush.xpose.msra.mxu0 %v320
        %348 = vmatpush.xpose.msra.mxu0 %v319
        %349 = vmatpush.xpose.msra.mxu0 %v318
        %350 = vmatmul.f32.gmra.mxu0 %v281
        %v351 = vpop.f32.mrf.mxu0
        %v352 = vadd.f32 0.0, %v351
        %353 = vdwg.mxu0
        %v354 = vmul.f32 %v265, %v265
        %v355 = vmul.f32 %v266, %v266
        %v356 = vmul.f32 %v267, %v267
        %v357 = vmul.f32 %v268, %v268
        %v358 = vmul.f32 %v269, %v269
        %v359 = vmul.f32 %v270, %v270
        %v360 = vmul.f32 %v271, %v271
        %v361 = vmul.f32 %v272, %v272
        %v362 = vmul.f32 %v273, %v273
        %v363 = vmul.f32 %v274, %v274
        %v364 = vmul.f32 %v275, %v275
        %v365 = vmul.f32 %v276, %v276
        %v366 = vmul.f32 %v277, %v277
        %v367 = vmul.f32 %v278, %v278
        %v368 = vmul.f32 %v279, %v279
        %v369 = vmul.f32 %v280, %v280
        %370 = vmatpush.xpose.msra.mxu0 %v369
        %371 = vmatpush.xpose.msra.mxu0 %v368
        %372 = vmatpush.xpose.msra.mxu0 %v367
        %373 = vmatpush.xpose.msra.mxu0 %v366
        %374 = vmatpush.xpose.msra.mxu0 %v365
        %375 = vmatpush.xpose.msra.mxu0 %v364
        %376 = vmatpush.xpose.msra.mxu0 %v363
        %377 = vmatpush.xpose.msra.mxu0 %v362
        %378 = vmatpush.xpose.msra.mxu0 %v361
        %379 = vmatpush.xpose.msra.mxu0 %v360
        %380 = vmatpush.xpose.msra.mxu0 %v359
        %381 = vmatpush.xpose.msra.mxu0 %v358
        %382 = vmatpush.xpose.msra.mxu0 %v357
        %383 = vmatpush.xpose.msra.mxu0 %v356
        %384 = vmatpush.xpose.msra.mxu0 %v355
        %385 = vmatpush.xpose.msra.mxu0 %v354
        %386 = vmatmul.f32.gmra.mxu0 %v281
        %v387 = vpop.f32.mrf.mxu0
        %v388 = vadd.f32 0.0, %v387
        %389 = vdwg.mxu0
        %v390 = vmul.f32 %v352, %v388
        %v391 = vmax.f32 %v390, 1e-16
        %v392 = vrsqrt.pop %v391
        %v393 = vmul.f32 %v392, %v391
        %v394 = vmul.f32 %v393, %v392
        %v395 = vmul.f32 0.5, %v394
        %v396 = vsub.f32 1.5, %v395
        %v397 = vmul.f32 %v392, %v396
        %vm398 = vweird.f32 %v391
        %vm399 = vweird.f32 %v392
        %vm400 = vmor %vm398, %vm399
        %v401 = vsel %vm400, %v392, %v397
        %v402 = vmul.f32 %v316, %v401
        %v403 = vadd.f32 %v402, 1.0
        %v404 = vmul.f32 %v403, 0.5
        %405 = vst [vmem:[%s246] sm:$0xff] %v404
        %s406 = sand.u32 %s104, 1
        %s407 = scalar_lea.sflag [#allocation4], %s406
        %s408 = sand.u32 %s104, 1
        %s409 = smul.addr %s408, 8
        %s410 = scalar_lea.vmem [#allocation8], %s409
        // Predicated region
        $region45: #{tpu_custom_call.1} parent=31 // pred_check
          %p411 = pneg %p114
        $region46: #{tpu_custom_call.1} parent=31 // pred_check_branch
          %413 = sbr.rel (%p411) target = $region48
        $region47: #{tpu_custom_call.1} parent=31 // pred_region
          %415 = vsyncadd %s407, 0
          %s416 = smul.addr %s23, 8
          %s417 = scalar_lea.hbm %s3, %s416
          %s419 = sshll.u32 %s410, 4
          %s420 = int_to_ptr.vmem [resolvable:$true] %s419
          %s421 = sshll.u32 %s417, 4
          %s422 = int_to_ptr.hbm [resolvable:$true] %s421
          %424 = dma.vmem_to_hbm [thread:$0]  %s420, 128, %s422, %s407
        $region48: #{tpu_custom_call.1} parent=31 // pred_fallthru
          _
      $region32: #{tpu_custom_call.1} parent=5 // pred_fallthru
        _
      %p425 = scmp.le.s32.totalorder 2, %s18
      // Predicated region
      $region49: #{tpu_custom_call.1} parent=5 // pred_check
        %p426 = pneg %p425
      $region50: #{tpu_custom_call.1} parent=5 // pred_check_branch
        %428 = sbr.rel (%p426) target = $region52
      $region51: #{tpu_custom_call.1} parent=5 // pred_region
        %s429 = ssub.s32 %s18, 2
        // Predicated region
        $region53: #{tpu_custom_call.1} parent=51 // pred_check
          %p430 = pneg %p120
        $region54: #{tpu_custom_call.1} parent=51 // pred_check_branch
          %432 = sbr.rel (%p430) target = $region56
        $region55: #{tpu_custom_call.1} parent=51 // pred_region
          %s433 = sand.u32 %s105, 1
          %s434 = scalar_lea.sflag [#allocation4], %s433
          %s435 = sand.u32 %s105, 1
          %s436 = smul.addr %s435, 8
          %s437 = scalar_lea.vmem [#allocation8], %s436
          %439 = dma.done %s434, 128
        $region56: #{tpu_custom_call.1} parent=51 // pred_fallthru
          _
      $region52: #{tpu_custom_call.1} parent=5 // pred_fallthru
        _
    $region6: #{tpu_custom_call.1} parent=1 // loop_footer
      %s22 = sadd.s32 1, %s18
    $region7: #{tpu_custom_call.1} parent=1 // loop_footer_branch
      %17 = sbr.rel target = $region3
    $region8: #{tpu_custom_call.1} parent=1 // loop_exit
      _
    %440 = vsyncpa [#allocation3], 1
    %s441 = scalar_lea.sflag [#allocation3], 1
    %442 = vsyncpa %s441, 1
    %443 = vsyncpa [#allocation6], 1
    %s444 = scalar_lea.sflag [#allocation6], 1
    %445 = vsyncpa %s444, 1
    %446 = vsyncpa [#allocation4], 1
    %s447 = scalar_lea.sflag [#allocation4], 1
    %448 = vsyncpa %s447, 1

</llo_original>
